<compile_context>
chip_gen: v6e
topology: v6e:2x2x1
jax: 0.10.0
libtpu: 0.0.40
codegen_flags: <defaults>
</compile_context>

<pallas_src>
import functools

import jax
import jax.numpy as jnp
from jax.experimental import pallas as pl
from jax.experimental.pallas import tpu as pltpu

_LANES = 128
_BATCH_ALIGN = 16  # bf16 LHS packs 16 sublanes per vreg


def _round_up(x: int, m: int) -> int:
    return ((x + m - 1) // m) * m


def _activation_dtype():
    """bf16 activations on v6e/v7x (bf16 VPU/EUP); f32 on v5e. Perf-only gate."""
    try:
        kind = jax.devices()[0].device_kind.lower()
    except Exception:
        return jnp.float32
    if "v5 lite" in kind or "v5lite" in kind or "v5e" in kind:
        return jnp.float32
    return jnp.bfloat16


def _make_actor_kernel(num_hidden: int, max_action: float, act_dtype):
    """Fused MLP + tanh head kernel for a fixed number of hidden layers."""

    def kernel(*refs):
        # refs layout:
        #   refs[0]                      : x       (tb, state_dim)          f32
        #   refs[1 + 2*i], refs[2 + 2*i] : W_i (bf16, lane-padded), b_i (f32)
        #   refs[-3], refs[-2]           : W_head (bf16), b_head (f32)
        #   refs[-1]                     : out     (tb, action_dim)         f32
        x_ref = refs[0]
        out_ref = refs[-1]

        h = x_ref[...]
        if act_dtype == jnp.bfloat16:
            h = h.astype(jnp.bfloat16)  # cast once; stays bf16 between layers

        idx = 1
        for _ in range(num_hidden):
            w = refs[idx][...]       # bf16 weights (MXU-native)
            b = refs[idx + 1][...]   # f32 bias
            idx += 2
            y = jnp.dot(h.astype(jnp.bfloat16), w,
                        preferred_element_type=jnp.float32) + b
            y = y.astype(act_dtype)
            h = y * jax.nn.sigmoid(y)  # SiLU (bf16 on v6e/v7x, f32 on v5e)

        w_head = refs[idx][...]
        b_head = refs[idx + 1][...]
        a = jnp.dot(h.astype(jnp.bfloat16), w_head,
                    preferred_element_type=jnp.float32) + b_head
        out_ref[...] = (max_action * jnp.tanh(a)).astype(out_ref.dtype)

    return kernel


def init_ddpg_actor_params(key, state_dim, action_dim, hidden_dims):
    """Synthetic parameters in PyTorch nn.Linear init style.

    Weights are stored pre-transposed as (in_features, out_features) in bf16
    (MXU operand dtype); biases are f32 with shape (1, out_features).
    """
    params = []
    dims = [state_dim] + list(hidden_dims)
    for i in range(len(hidden_dims)):
        key, kw, kb = jax.random.split(key, 3)
        bound = 1.0 / float(dims[i]) ** 0.5
        w = jax.random.uniform(kw, (dims[i], dims[i + 1]), jnp.float32, -bound, bound)
        b = jax.random.uniform(kb, (1, dims[i + 1]), jnp.float32, -bound, bound)
        params += [w.astype(jnp.bfloat16), b]
    key, kw, kb = jax.random.split(key, 3)
    bound = 1.0 / float(dims[-1]) ** 0.5
    w_head = jax.random.uniform(kw, (dims[-1], action_dim), jnp.float32, -bound, bound)
    b_head = jax.random.uniform(kb, (1, action_dim), jnp.float32, -bound, bound)
    params += [w_head.astype(jnp.bfloat16), b_head]
    return params


@functools.partial(jax.jit, static_argnames=("num_hidden", "action_dim", "max_action"))
def ddpg_actor_forward(x, params, *, num_hidden, action_dim, max_action):
    batch, state_dim = x.shape
    hidden_dims = [int(params[2 * i].shape[1]) for i in range(num_hidden)]
    act_dtype = _activation_dtype()

    # --- lane-pad every hidden width to a multiple of 128. Padding is all-zero
    #     (layer-i columns + bias, layer-(i+1)/head rows), and SiLU(0)=0, so the
    #     padded lanes stay exactly zero through the whole network.
    padded_hidden = [_round_up(h, _LANES) for h in hidden_dims]
    in_dims = [state_dim] + padded_hidden
    kernel_params = []
    for i in range(num_hidden):
        w, b = params[2 * i], params[2 * i + 1]
        w = jnp.pad(w, ((0, in_dims[i] - w.shape[0]),
                        (0, padded_hidden[i] - w.shape[1])))
        b = jnp.pad(b, ((0, 0), (0, padded_hidden[i] - b.shape[1])))
        kernel_params += [w, b]
    w_head, b_head = params[2 * num_hidden], params[2 * num_hidden + 1]
    w_head = jnp.pad(w_head, ((0, in_dims[-1] - w_head.shape[0]), (0, 0)))
    kernel_params += [w_head, b_head]

    # --- batch tile: >=2 grid steps when batch >= 32 (both v7x TCs active),
    #     multiple of 16 (bf16 sublane packing), cap 2048 to amortize per-step
    #     overhead on single-TC v5e/v6e while staying far under VMEM.
    tb = min(_round_up(pl.cdiv(batch, 2), _BATCH_ALIGN), 2048)
    grid = (pl.cdiv(batch, tb),)

    # --- VMEM budget estimate: resident weights + double-buffered x/out tiles +
    #     a few intermediate activation slabs; clamp under v7x's 64 MiB.
    weight_bytes = sum(int(p.size) * p.dtype.itemsize for p in kernel_params)
    widest = max([state_dim, action_dim] + padded_hidden)
    io_bytes = 2 * 2 * tb * (state_dim + action_dim) * 4
    scratch_bytes = 4 * tb * widest * 4
    vmem_limit = int(min(max(32 << 20,
                             2 * (weight_bytes + io_bytes + scratch_bytes)),
                         48 << 20))

    # --- cost hint for XLA scheduling around the custom call.
    dims = [state_dim] + padded_hidden + [action_dim]
    flops = 2 * batch * sum(dims[i] * dims[i + 1] for i in range(len(dims) - 1))
    transcendentals = batch * (sum(padded_hidden) + action_dim)
    bytes_accessed = int(batch * state_dim * 4 + weight_bytes
                         + batch * action_dim * 4)
    cost = pl.CostEstimate(flops=int(flops),
                           transcendentals=int(transcendentals),
                           bytes_accessed=bytes_accessed)

    x_spec = pl.BlockSpec((tb, state_dim), lambda i: (i, 0))
    # Constant block index -> parameters stay resident in VMEM across the grid.
    param_specs = [pl.BlockSpec(p.shape, lambda i: (0, 0)) for p in kernel_params]
    # Unpadded output: no padded HBM writeback and no wrapper post-slice pass.
    out_spec = pl.BlockSpec((tb, action_dim), lambda i: (i, 0))

    return pl.pallas_call(
        _make_actor_kernel(num_hidden, float(max_action), act_dtype),
        out_shape=jax.ShapeDtypeStruct((batch, action_dim), jnp.float32),
        grid=grid,
        in_specs=[x_spec] + param_specs,
        out_specs=out_spec,
        compiler_params=pltpu.CompilerParams(
            dimension_semantics=("parallel",),
            vmem_limit_bytes=vmem_limit,
        ),
        cost_estimate=cost,
    )(x, *kernel_params)


def _reference_forward(x, params, num_hidden, max_action, act_dtype):
    """Pure-JAX reference emulating the kernel's mixed precision."""
    h = x.astype(act_dtype) if act_dtype == jnp.bfloat16 else x
    for i in range(num_hidden):
        w, b = params[2 * i], params[2 * i + 1]
        y = jnp.dot(h.astype(jnp.bfloat16), w,
                    preferred_element_type=jnp.float32) + b
        y = y.astype(act_dtype)
        h = y * jax.nn.sigmoid(y)
    w_head, b_head = params[2 * num_hidden], params[2 * num_hidden + 1]
    a = jnp.dot(h.astype(jnp.bfloat16), w_head,
                preferred_element_type=jnp.float32) + b_head
    return max_action * jnp.tanh(a)


if __name__ == "__main__":
    # Small, module-consistent shapes.
    batch = 8
    state_dim = 16
    hidden_dims = [32, 32]
    action_dim = 8
    max_action = 1.0

    key = jax.random.PRNGKey(0)
    key, kx = jax.random.split(key)
    x = jax.random.normal(kx, (batch, state_dim), dtype=jnp.float32)
    params = init_ddpg_actor_params(key, state_dim, action_dim, hidden_dims)

    out = ddpg_actor_forward(
        x,
        params,
        num_hidden=len(hidden_dims),
        action_dim=action_dim,
        max_action=max_action,
    )
    out = jax.block_until_ready(out)

    ref = _reference_forward(x, params, len(hidden_dims), max_action,
                             _activation_dtype())
    assert out.shape == (batch, action_dim)
    # bf16 matmul operands (and bf16 activations on v6e/v7x) with f32
    # accumulation -> loosened tolerance vs a pure-f32 baseline.
    assert jnp.allclose(out, ref, atol=1e-2, rtol=1e-2), "mismatch vs JAX reference"

    print("KERNEL_OK")
</pallas_src>

<mosaic_0001>
module attributes {stable_mosaic.version = 11 : i64} {
  func.func @kernel(%arg0: i32, %arg1: memref<16x16xf32, #tpu.memory_space<vmem>>, %arg2: memref<16x128xbf16, #tpu.memory_space<vmem>>, %arg3: memref<1x128xf32, #tpu.memory_space<vmem>>, %arg4: memref<128x128xbf16, #tpu.memory_space<vmem>>, %arg5: memref<1x128xf32, #tpu.memory_space<vmem>>, %arg6: memref<128x8xbf16, #tpu.memory_space<vmem>>, %arg7: memref<1x8xf32, #tpu.memory_space<vmem>>, %arg8: memref<16x8xf32, #tpu.memory_space<vmem>>) attributes {dimension_semantics = [#tpu.dimension_semantics<parallel>], iteration_bounds = array<i64: 1>, scalar_prefetch = 0 : i64, scratch_operands = 0 : i64, tpu.core_type = #tpu.core_type<tc>, window_params = [{transform_indices = @transform_0, window_bounds = array<i64: 16, 16>}, {pipeline_mode = #tpu.pipeline_mode<synchronous>, transform_indices = @transform_1, window_bounds = array<i64: 16, 128>}, {pipeline_mode = #tpu.pipeline_mode<synchronous>, transform_indices = @transform_2, window_bounds = array<i64: 1, 128>}, {pipeline_mode = #tpu.pipeline_mode<synchronous>, transform_indices = @transform_3, window_bounds = array<i64: 128, 128>}, {pipeline_mode = #tpu.pipeline_mode<synchronous>, transform_indices = @transform_4, window_bounds = array<i64: 1, 128>}, {pipeline_mode = #tpu.pipeline_mode<synchronous>, transform_indices = @transform_5, window_bounds = array<i64: 128, 8>}, {pipeline_mode = #tpu.pipeline_mode<synchronous>, transform_indices = @transform_6, window_bounds = array<i64: 1, 8>}, {transform_indices = @transform_7, window_bounds = array<i64: 16, 8>}]} {
    %c0 = arith.constant 0 : index
    %c0_0 = arith.constant 0 : index
    %0 = vector.load %arg1[%c0, %c0_0] : memref<16x16xf32, #tpu.memory_space<vmem>>, vector<16x16xf32>
    %1 = arith.truncf %0 : vector<16x16xf32> to vector<16x16xbf16>
    %c0_1 = arith.constant 0 : index
    %c0_2 = arith.constant 0 : index
    %2 = vector.load %arg2[%c0_1, %c0_2] : memref<16x128xbf16, #tpu.memory_space<vmem>>, vector<16x128xbf16>
    %c0_3 = arith.constant 0 : index
    %c0_4 = arith.constant 0 : index
    %3 = vector.load %arg3[%c0_3, %c0_4] : memref<1x128xf32, #tpu.memory_space<vmem>>, vector<1x128xf32>
    %cst = arith.constant dense<0.000000e+00> : vector<16x128xf32>
    %4 = tpu.matmul %1, %2, %cst {dimension_numbers = #tpu.dot_dimension_numbers<[1], [0], [0], [1], [0, 0, 1, 1], [], []>} : vector<16x16xbf16>, vector<16x128xbf16>, vector<16x128xf32> -> vector<16x128xf32>
    %5 = vector.broadcast %3 : vector<1x128xf32> to vector<16x128xf32>
    %6 = arith.addf %4, %5 : vector<16x128xf32>
    %7 = arith.truncf %6 : vector<16x128xf32> to vector<16x128xbf16>
    %8 = arith.negf %7 : vector<16x128xbf16>
    %9 = math.exp %8 : vector<16x128xbf16>
    %cst_5 = arith.constant 1.000000e+00 : bf16
    %10 = vector.broadcast %cst_5 : bf16 to vector<16x128xbf16>
    %11 = arith.addf %10, %9 : vector<16x128xbf16>
    %12 = arith.divf %10, %11 : vector<16x128xbf16>
    %13 = arith.mulf %7, %12 : vector<16x128xbf16>
    %c0_6 = arith.constant 0 : index
    %c0_7 = arith.constant 0 : index
    %14 = vector.load %arg4[%c0_6, %c0_7] : memref<128x128xbf16, #tpu.memory_space<vmem>>, vector<128x128xbf16>
    %c0_8 = arith.constant 0 : index
    %c0_9 = arith.constant 0 : index
    %15 = vector.load %arg5[%c0_8, %c0_9] : memref<1x128xf32, #tpu.memory_space<vmem>>, vector<1x128xf32>
    %cst_10 = arith.constant dense<0.000000e+00> : vector<16x128xf32>
    %16 = tpu.matmul %13, %14, %cst_10 {dimension_numbers = #tpu.dot_dimension_numbers<[1], [0], [0], [1], [0, 0, 1, 1], [], []>} : vector<16x128xbf16>, vector<128x128xbf16>, vector<16x128xf32> -> vector<16x128xf32>
    %17 = vector.broadcast %15 : vector<1x128xf32> to vector<16x128xf32>
    %18 = arith.addf %16, %17 : vector<16x128xf32>
    %19 = arith.truncf %18 : vector<16x128xf32> to vector<16x128xbf16>
    %20 = arith.negf %19 : vector<16x128xbf16>
    %21 = math.exp %20 : vector<16x128xbf16>
    %cst_11 = arith.constant 1.000000e+00 : bf16
    %22 = vector.broadcast %cst_11 : bf16 to vector<16x128xbf16>
    %23 = arith.addf %22, %21 : vector<16x128xbf16>
    %24 = arith.divf %22, %23 : vector<16x128xbf16>
    %25 = arith.mulf %19, %24 : vector<16x128xbf16>
    %c0_12 = arith.constant 0 : index
    %c0_13 = arith.constant 0 : index
    %26 = vector.load %arg6[%c0_12, %c0_13] : memref<128x8xbf16, #tpu.memory_space<vmem>>, vector<128x8xbf16>
    %c0_14 = arith.constant 0 : index
    %c0_15 = arith.constant 0 : index
    %27 = vector.load %arg7[%c0_14, %c0_15] : memref<1x8xf32, #tpu.memory_space<vmem>>, vector<1x8xf32>
    %cst_16 = arith.constant dense<0.000000e+00> : vector<16x8xf32>
    %28 = tpu.matmul %25, %26, %cst_16 {dimension_numbers = #tpu.dot_dimension_numbers<[1], [0], [0], [1], [0, 0, 1, 1], [], []>} : vector<16x128xbf16>, vector<128x8xbf16>, vector<16x8xf32> -> vector<16x8xf32>
    %29 = vector.broadcast %27 : vector<1x8xf32> to vector<16x8xf32>
    %30 = arith.addf %28, %29 : vector<16x8xf32>
    %31 = math.tanh %30 : vector<16x8xf32>
    %cst_17 = arith.constant 1.000000e+00 : f32
    %32 = vector.broadcast %cst_17 : f32 to vector<16x8xf32>
    %33 = arith.mulf %32, %31 : vector<16x8xf32>
    %c0_18 = arith.constant 0 : index
    %c0_19 = arith.constant 0 : index
    %34 = vector.load %arg8[%c0_18, %c0_19] : memref<16x8xf32, #tpu.memory_space<vmem>>, vector<16x8xf32>
    tpu.vector_store %arg8[%c0_18, %c0_19], %33 {strides = array<i32>} : memref<16x8xf32, #tpu.memory_space<vmem>>, vector<16x8xf32>,
    return
  }
  func.func @transform_0(%arg0: i32) -> (i32, i32) {
    %c0_i32 = arith.constant 0 : i32
    %c0_i32_0 = arith.constant 0 : i32
    return %arg0, %c0_i32 : i32, i32
  }
  func.func @transform_1(%arg0: i32) -> (i32, i32) {
    %c0_i32 = arith.constant 0 : i32
    %c0_i32_0 = arith.constant 0 : i32
    %c0_i32_1 = arith.constant 0 : i32
    return %c0_i32, %c0_i32_0 : i32, i32
  }
  func.func @transform_2(%arg0: i32) -> (i32, i32) {
    %c0_i32 = arith.constant 0 : i32
    %c0_i32_0 = arith.constant 0 : i32
    %c0_i32_1 = arith.constant 0 : i32
    return %c0_i32, %c0_i32_0 : i32, i32
  }
  func.func @transform_3(%arg0: i32) -> (i32, i32) {
    %c0_i32 = arith.constant 0 : i32
    %c0_i32_0 = arith.constant 0 : i32
    %c0_i32_1 = arith.constant 0 : i32
    return %c0_i32, %c0_i32_0 : i32, i32
  }
  func.func @transform_4(%arg0: i32) -> (i32, i32) {
    %c0_i32 = arith.constant 0 : i32
    %c0_i32_0 = arith.constant 0 : i32
    %c0_i32_1 = arith.constant 0 : i32
    return %c0_i32, %c0_i32_0 : i32, i32
  }
  func.func @transform_5(%arg0: i32) -> (i32, i32) {
    %c0_i32 = arith.constant 0 : i32
    %c0_i32_0 = arith.constant 0 : i32
    %c0_i32_1 = arith.constant 0 : i32
    return %c0_i32, %c0_i32_0 : i32, i32
  }
  func.func @transform_6(%arg0: i32) -> (i32, i32) {
    %c0_i32 = arith.constant 0 : i32
    %c0_i32_0 = arith.constant 0 : i32
    %c0_i32_1 = arith.constant 0 : i32
    return %c0_i32, %c0_i32_0 : i32, i32
  }
  func.func @transform_7(%arg0: i32) -> (i32, i32) {
    %c0_i32 = arith.constant 0 : i32
    %c0_i32_0 = arith.constant 0 : i32
    return %arg0, %c0_i32 : i32, i32
  }
}

</mosaic_0001>

<llo_original>
// kernel: ddpg_actor_forward.1
$region0: #{ddpg_actor_forward.1}
  #allocation0 [shape = 'u32[]', space=smem, size = 0x4, offset = 0x4, fixed_abs, tag = 'smem constant byte address 0x4 - core index']
  #allocation1 [shape = 'u32[144,128]{1,0:T(1,128)}', space=vmem, size = 0x12000, scoped, tag = 'internal scratch']
  %s0 = inlined_call_operand.vmem [shape: f32[8,16], index: 0, kind: input, shape index: {}]
  %s1 = inlined_call_operand.vmem [shape: bf16[16,128], index: 1, kind: input, shape index: {}]
  %s2 = inlined_call_operand.vmem [shape: f32[1,128], index: 2, kind: input, shape index: {}]
  %s3 = inlined_call_operand.vmem [shape: bf16[128,128], index: 3, kind: input, shape index: {}]
  %s4 = inlined_call_operand.vmem [shape: f32[1,128], index: 4, kind: input, shape index: {}]
  %s5 = inlined_call_operand.vmem [shape: bf16[128,8], index: 5, kind: input, shape index: {}]
  %s6 = inlined_call_operand.vmem [shape: f32[1,8], index: 6, kind: input, shape index: {}]
  %s7 = inlined_call_operand.hbm [shape: f32[8,8], index: 7, kind: output, shape index: {}]
  %s8 = sld [smem:[#allocation0]]
  $region38: #{ddpg_actor_forward.1} parent=0
    _
  %s10 = ssub.s32 1, %s8
  %s11 = scalar_select 0, %s10, %s8
  $region1: #{ddpg_actor_forward.1} parent=0
    #allocation2 [shape = 'u8[8192]{0}', space=vmem, size = 0x2000, scoped, tag = 'output window, operand 0, single buffered']
    #allocation3 [shape = 's32[1]{0}', space=sflag, size = 0x4, scoped, tag = 'scoped memory for ddpg_actor_forward.1']
    %12 = vsyncpa [#allocation3], 0
    // Predicated region
    $region2: #{ddpg_actor_forward.1} parent=1 // pred_check
      _
    $region3: #{ddpg_actor_forward.1} parent=1 // pred_check_branch
      %14 = sbr.rel (0) target = $region5
    $region4: #{ddpg_actor_forward.1} parent=1 // pred_region
      _
    $region5: #{ddpg_actor_forward.1} parent=1 // pred_fallthru
      _
    // Predicated region
    $region6: #{ddpg_actor_forward.1} parent=1 // pred_check
      _
    $region7: #{ddpg_actor_forward.1} parent=1 // pred_check_branch
      %16 = sbr.rel (0) target = $region9
    $region8: #{ddpg_actor_forward.1} parent=1 // pred_region
      _
    $region9: #{ddpg_actor_forward.1} parent=1 // pred_fallthru
      _
    // Predicated region
    $region10: #{ddpg_actor_forward.1} parent=1 // pred_check
      _
    $region11: #{ddpg_actor_forward.1} parent=1 // pred_check_branch
      %18 = sbr.rel (0) target = $region13
    $region12: #{ddpg_actor_forward.1} parent=1 // pred_region
      _
    $region13: #{ddpg_actor_forward.1} parent=1 // pred_fallthru
      _
    // Predicated region
    $region14: #{ddpg_actor_forward.1} parent=1 // pred_check
      _
    $region15: #{ddpg_actor_forward.1} parent=1 // pred_check_branch
      %20 = sbr.rel (0) target = $region17
    $region16: #{ddpg_actor_forward.1} parent=1 // pred_region
      _
    $region17: #{ddpg_actor_forward.1} parent=1 // pred_fallthru
      _
    // Predicated region
    $region18: #{ddpg_actor_forward.1} parent=1 // pred_check
      _
    $region19: #{ddpg_actor_forward.1} parent=1 // pred_check_branch
      %22 = sbr.rel (0) target = $region21
    $region20: #{ddpg_actor_forward.1} parent=1 // pred_region
      _
    $region21: #{ddpg_actor_forward.1} parent=1 // pred_fallthru
      _
    // Predicated region
    $region22: #{ddpg_actor_forward.1} parent=1 // pred_check
      _
    $region23: #{ddpg_actor_forward.1} parent=1 // pred_check_branch
      %24 = sbr.rel (0) target = $region25
    $region24: #{ddpg_actor_forward.1} parent=1 // pred_region
      _
    $region25: #{ddpg_actor_forward.1} parent=1 // pred_fallthru
      _
    // Predicated region
    $region26: #{ddpg_actor_forward.1} parent=1 // pred_check
      _
    $region27: #{ddpg_actor_forward.1} parent=1 // pred_check_branch
      %26 = sbr.rel (0) target = $region29
    $region28: #{ddpg_actor_forward.1} parent=1 // pred_region
      _
    $region29: #{ddpg_actor_forward.1} parent=1 // pred_fallthru
      _
    %v29 = vld [vmem:[%s0] sm:$0xff]
    %v30 = vld [vmem:[%s0 + $0x8] sm:$0xff]
    %v31 = vpack.c.bf16 %v30, %v29
    %v32 = vld [vmem:[%s1] sm:$0xf]
    %v33 = vld [vmem:[%s1 + $0x4] sm:$0xf]
    %v34 = vld [vmem:[%s2] sm:$0x1]
    %v36 = vlaneseq
    %v37 = vshrl.u32 %v36, 7
    %v38 = vsub.s32 0, %v37
    %v39 = vrot.slane %v34, %v38
    %v43 = vunpack.c.l.b16 %v32
    %v44 = vunpack.c.l.b16 %v33
    %v45 = vpack.c.b16 %v44, %v43
    %vm47 = vcmask 130048
    %v49 = vsel %vm47, %v31, 0
    %51 = vmatprep.subr.bf16.mxu0 0
    %52 = vmatpush1.bf16.msra.mxu0 0
    %53 = vmatprep.subr.bf16.mxu0 0
    %54 = vmatpush1.bf16.msra.mxu0 0
    %55 = vmatprep.subr.bf16.mxu0 0
    %56 = vmatpush1.bf16.msra.mxu0 0
    %57 = vmatprep.subr.bf16.mxu0 0
    %58 = vmatpush1.bf16.msra.mxu0 0
    %59 = vmatprep.subr.bf16.mxu0 0
    %60 = vmatpush1.bf16.msra.mxu0 0
    %61 = vmatprep.subr.bf16.mxu0 0
    %62 = vmatpush1.bf16.msra.mxu0 0
    %63 = vmatprep.subr.bf16.mxu0 0
    %64 = vmatpush1.bf16.msra.mxu0 0
    %65 = vmatprep.subr.bf16.mxu0 0
    %66 = vmatpush1.bf16.msra.mxu0 %v45
    %67 = vmatprep.subr.bf16.mxu0 0
    %68 = vmatpush2.bf16.msra.mxu0 0
    %69 = vmatprep.subr.bf16.mxu0 0
    %70 = vmatpush2.bf16.msra.mxu0 0
    %71 = vmatprep.subr.bf16.mxu0 0
    %72 = vmatpush2.bf16.msra.mxu0 0
    %73 = vmatprep.subr.bf16.mxu0 0
    %74 = vmatpush2.bf16.msra.mxu0 0
    %75 = vmatprep.subr.bf16.mxu0 0
    %76 = vmatpush2.bf16.msra.mxu0 0
    %77 = vmatprep.subr.bf16.mxu0 0
    %78 = vmatpush2.bf16.msra.mxu0 0
    %79 = vmatprep.subr.bf16.mxu0 0
    %80 = vmatpush2.bf16.msra.mxu0 0
    %81 = vmatprep.subr.bf16.mxu0 0
    %82 = vmatpush2.bf16.msra.mxu0 0
    %83 = vmatprep.mubr.bf16.mxu0 0
    %84 = vmatmul.mubr.bf16.gmra.mxu0 %v49
    %v85 = vpop.f32.mrf.mxu0
    %v86 = vadd.f32 %v39, %v85
    %v87 = vpop.f32.mrf.mxu0
    %v88 = vpop.f32.mrf.mxu0
    %v89 = vadd.f32 %v39, %v88
    %v90 = vpop.f32.mrf.mxu0
    %91 = vdwg.mxu0
    %v92 = vpack.c.bf16 %v89, %v86
    %v93 = vxor.u32 %v92, 2147516416
    %v95 = vmul.bf16 %v93, 1069105081
    %v96 = vpow.bf16.pop %v95
    %v97 = vadd.bf16 %v96, 1065369472
    %v98 = vrcp.bf16.pop %v97
    %v99 = vmul.bf16 1065369472, %v98
    %v100 = vmul.bf16 %v92, %v99
    %v101 = vld [vmem:[%s3] sm:$0xf]
    %v102 = vld [vmem:[%s3 + $0x4] sm:$0xf]
    %v103 = vld [vmem:[%s3 + $0x8] sm:$0xf]
    %v104 = vld [vmem:[%s3 + $0xc] sm:$0xf]
    %v105 = vld [vmem:[%s3 + $0x10] sm:$0xf]
    %v106 = vld [vmem:[%s3 + $0x14] sm:$0xf]
    %v107 = vld [vmem:[%s3 + $0x18] sm:$0xf]
    %v108 = vld [vmem:[%s3 + $0x1c] sm:$0xf]
    %v109 = vld [vmem:[%s3 + $0x20] sm:$0xf]
    %v110 = vld [vmem:[%s3 + $0x24] sm:$0xf]
    %v111 = vld [vmem:[%s3 + $0x28] sm:$0xf]
    %v112 = vld [vmem:[%s3 + $0x2c] sm:$0xf]
    %v113 = vld [vmem:[%s3 + $0x30] sm:$0xf]
    %v114 = vld [vmem:[%s3 + $0x34] sm:$0xf]
    %v115 = vld [vmem:[%s3 + $0x38] sm:$0xf]
    %v116 = vld [vmem:[%s3 + $0x3c] sm:$0xf]
    %v117 = vld [vmem:[%s4] sm:$0x1]
    %v119 = vlaneseq
    %v120 = vshrl.u32 %v119, 7
    %v121 = vsub.s32 0, %v120
    %v122 = vrot.slane %v117, %v121
    %v140 = vunpack.c.l.b16 %v101
    %v141 = vunpack.c.l.b16 %v102
    %v142 = vunpack.c.l.b16 %v103
    %v143 = vunpack.c.l.b16 %v104
    %v144 = vunpack.c.l.b16 %v105
    %v145 = vunpack.c.l.b16 %v106
    %v146 = vunpack.c.l.b16 %v107
    %v147 = vunpack.c.l.b16 %v108
    %v148 = vunpack.c.l.b16 %v109
    %v149 = vunpack.c.l.b16 %v110
    %v150 = vunpack.c.l.b16 %v111
    %v151 = vunpack.c.l.b16 %v112
    %v152 = vunpack.c.l.b16 %v113
    %v153 = vunpack.c.l.b16 %v114
    %v154 = vunpack.c.l.b16 %v115
    %v155 = vunpack.c.l.b16 %v116
    %v156 = vpack.c.b16 %v141, %v140
    %v157 = vpack.c.b16 %v143, %v142
    %v158 = vpack.c.b16 %v145, %v144
    %v159 = vpack.c.b16 %v147, %v146
    %v160 = vpack.c.b16 %v149, %v148
    %v161 = vpack.c.b16 %v151, %v150
    %v162 = vpack.c.b16 %v153, %v152
    %v163 = vpack.c.b16 %v155, %v154
    %172 = vmatprep.subr.bf16.mxu0 0
    %173 = vmatpush1.bf16.msra.mxu0 %v163
    %174 = vmatprep.subr.bf16.mxu0 0
    %175 = vmatpush1.bf16.msra.mxu0 %v162
    %176 = vmatprep.subr.bf16.mxu0 0
    %177 = vmatpush1.bf16.msra.mxu0 %v161
    %178 = vmatprep.subr.bf16.mxu0 0
    %179 = vmatpush1.bf16.msra.mxu0 %v160
    %180 = vmatprep.subr.bf16.mxu0 0
    %181 = vmatpush1.bf16.msra.mxu0 %v159
    %182 = vmatprep.subr.bf16.mxu0 0
    %183 = vmatpush1.bf16.msra.mxu0 %v158
    %184 = vmatprep.subr.bf16.mxu0 0
    %185 = vmatpush1.bf16.msra.mxu0 %v157
    %186 = vmatprep.subr.bf16.mxu0 0
    %187 = vmatpush1.bf16.msra.mxu0 %v156
    %188 = vmatprep.subr.bf16.mxu0 0
    %189 = vmatpush2.bf16.msra.mxu0 0
    %190 = vmatprep.subr.bf16.mxu0 0
    %191 = vmatpush2.bf16.msra.mxu0 0
    %192 = vmatprep.subr.bf16.mxu0 0
    %193 = vmatpush2.bf16.msra.mxu0 0
    %194 = vmatprep.subr.bf16.mxu0 0
    %195 = vmatpush2.bf16.msra.mxu0 0
    %196 = vmatprep.subr.bf16.mxu0 0
    %197 = vmatpush2.bf16.msra.mxu0 0
    %198 = vmatprep.subr.bf16.mxu0 0
    %199 = vmatpush2.bf16.msra.mxu0 0
    %200 = vmatprep.subr.bf16.mxu0 0
    %201 = vmatpush2.bf16.msra.mxu0 0
    %202 = vmatprep.subr.bf16.mxu0 0
    %203 = vmatpush2.bf16.msra.mxu0 0
    %204 = vmatprep.mubr.bf16.mxu0 0
    %205 = vmatmul.mubr.bf16.gmra.mxu0 %v100
    %v206 = vpop.f32.mrf.mxu0
    %v207 = vadd.f32 %v122, %v206
    %v208 = vpop.f32.mrf.mxu0
    %v209 = vpop.f32.mrf.mxu0
    %v210 = vadd.f32 %v122, %v209
    %v211 = vpop.f32.mrf.mxu0
    %212 = vdwg.mxu0
    %v213 = vpack.c.bf16 %v210, %v207
    %v214 = vxor.u32 %v213, 2147516416
    %v216 = vmul.bf16 %v214, 1069105081
    %v217 = vpow.bf16.pop %v216
    %v218 = vadd.bf16 %v217, 1065369472
    %v219 = vrcp.bf16.pop %v218
    %v220 = vmul.bf16 1065369472, %v219
    %v221 = vmul.bf16 %v213, %v220
    %v222 = vld [vmem:[%s5] sm:$0xf]
    %v223 = vld [vmem:[%s5 + $0x4] sm:$0xf]
    %v224 = vld [vmem:[%s5 + $0x8] sm:$0xf]
    %v225 = vld [vmem:[%s5 + $0xc] sm:$0xf]
    %v226 = vld [vmem:[%s5 + $0x10] sm:$0xf]
    %v227 = vld [vmem:[%s5 + $0x14] sm:$0xf]
    %v228 = vld [vmem:[%s5 + $0x18] sm:$0xf]
    %v229 = vld [vmem:[%s5 + $0x1c] sm:$0xf]
    %v230 = vld [vmem:[%s5 + $0x20] sm:$0xf]
    %v231 = vld [vmem:[%s5 + $0x24] sm:$0xf]
    %v232 = vld [vmem:[%s5 + $0x28] sm:$0xf]
    %v233 = vld [vmem:[%s5 + $0x2c] sm:$0xf]
    %v234 = vld [vmem:[%s5 + $0x30] sm:$0xf]
    %v235 = vld [vmem:[%s5 + $0x34] sm:$0xf]
    %v236 = vld [vmem:[%s5 + $0x38] sm:$0xf]
    %v237 = vld [vmem:[%s5 + $0x3c] sm:$0xf]
    %v238 = vld [vmem:[%s6] sm:$0x1]
    %v240 = vlaneseq
    %v241 = vshrl.u32 %v240, 7
    %v242 = vsub.s32 0, %v241
    %v243 = vrot.slane %v238, %v242
    %v261 = vunpack.c.l.b16 %v222
    %v262 = vunpack.c.l.b16 %v223
    %v263 = vunpack.c.l.b16 %v224
    %v264 = vunpack.c.l.b16 %v225
    %v265 = vunpack.c.l.b16 %v226
    %v266 = vunpack.c.l.b16 %v227
    %v267 = vunpack.c.l.b16 %v228
    %v268 = vunpack.c.l.b16 %v229
    %v269 = vunpack.c.l.b16 %v230
    %v270 = vunpack.c.l.b16 %v231
    %v271 = vunpack.c.l.b16 %v232
    %v272 = vunpack.c.l.b16 %v233
    %v273 = vunpack.c.l.b16 %v234
    %v274 = vunpack.c.l.b16 %v235
    %v275 = vunpack.c.l.b16 %v236
    %v276 = vunpack.c.l.b16 %v237
    %v277 = vpack.c.b16 %v262, %v261
    %v278 = vpack.c.b16 %v264, %v263
    %v279 = vpack.c.b16 %v266, %v265
    %v280 = vpack.c.b16 %v268, %v267
    %v281 = vpack.c.b16 %v270, %v269
    %v282 = vpack.c.b16 %v272, %v271
    %v283 = vpack.c.b16 %v274, %v273
    %v284 = vpack.c.b16 %v276, %v275
    %293 = vmatprep.subr.bf16.mxu0 0
    %294 = vmatpush1.bf16.msra.mxu0 %v284
    %295 = vmatprep.subr.bf16.mxu0 0
    %296 = vmatpush1.bf16.msra.mxu0 %v283
    %297 = vmatprep.subr.bf16.mxu0 0
    %298 = vmatpush1.bf16.msra.mxu0 %v282
    %299 = vmatprep.subr.bf16.mxu0 0
    %300 = vmatpush1.bf16.msra.mxu0 %v281
    %301 = vmatprep.subr.bf16.mxu0 0
    %302 = vmatpush1.bf16.msra.mxu0 %v280
    %303 = vmatprep.subr.bf16.mxu0 0
    %304 = vmatpush1.bf16.msra.mxu0 %v279
    %305 = vmatprep.subr.bf16.mxu0 0
    %306 = vmatpush1.bf16.msra.mxu0 %v278
    %307 = vmatprep.subr.bf16.mxu0 0
    %308 = vmatpush1.bf16.msra.mxu0 %v277
    %309 = vmatprep.subr.bf16.mxu0 0
    %310 = vmatpush2.bf16.msra.mxu0 0
    %311 = vmatprep.subr.bf16.mxu0 0
    %312 = vmatpush2.bf16.msra.mxu0 0
    %313 = vmatprep.subr.bf16.mxu0 0
    %314 = vmatpush2.bf16.msra.mxu0 0
    %315 = vmatprep.subr.bf16.mxu0 0
    %316 = vmatpush2.bf16.msra.mxu0 0
    %317 = vmatprep.subr.bf16.mxu0 0
    %318 = vmatpush2.bf16.msra.mxu0 0
    %319 = vmatprep.subr.bf16.mxu0 0
    %320 = vmatpush2.bf16.msra.mxu0 0
    %321 = vmatprep.subr.bf16.mxu0 0
    %322 = vmatpush2.bf16.msra.mxu0 0
    %323 = vmatprep.subr.bf16.mxu0 0
    %324 = vmatpush2.bf16.msra.mxu0 0
    %325 = vmatprep.mubr.bf16.mxu0 0
    %326 = vmatmul.mubr.bf16.gmra.mxu0 %v221
    %v327 = vpop.f32.mrf.mxu0
    %v328 = vadd.f32 %v243, %v327
    %v329 = vpop.f32.mrf.mxu0
    %v330 = vpop.f32.mrf.mxu0
    %v331 = vadd.f32 %v243, %v330
    %v332 = vpop.f32.mrf.mxu0
    %333 = vdwg.mxu0
    %v334 = vtanh.pop %v328
    %v335 = vtanh.pop %v331
    %vm336 = vcmask 64512
    %337 = vst.msk [vmem:[#allocation2] sm:$0xff] %vm336, %v334
    %338 = vst.msk [vmem:[#allocation2 + $0x8] sm:$0xff] %vm336, %v335
    // Predicated region
    $region30: #{ddpg_actor_forward.1} parent=1 // pred_check
      _
    $region31: #{ddpg_actor_forward.1} parent=1 // pred_check_branch
      %340 = sbr.rel (0) target = $region33
    $region32: #{ddpg_actor_forward.1} parent=1 // pred_region
      %s342 = ssub.s32 256, 128
      %343 = vsyncadd [#allocation3], %s342
      %s344 = sshll.u32 [#allocation2], 4
      %s345 = int_to_ptr.vmem [resolvable:$true] %s344
      %350 = dma.vmem_to_hbm [thread:$0]  %s345, 128, %s7, [#allocation3], 128, 128, 8
    $region33: #{ddpg_actor_forward.1} parent=1 // pred_fallthru
      _
    // Predicated region
    $region34: #{ddpg_actor_forward.1} parent=1 // pred_check
      _
    $region35: #{ddpg_actor_forward.1} parent=1 // pred_check_branch
      %352 = sbr.rel (0) target = $region37
    $region36: #{ddpg_actor_forward.1} parent=1 // pred_region
      %353 = dma.done [#allocation3], 256
    $region37: #{ddpg_actor_forward.1} parent=1 // pred_fallthru
      _
    %354 = vsyncpa [#allocation3], 1

</llo_original>
